<compile_context>
chip_gen: v5e
topology: v5e:2x2
jax: 0.10.0
libtpu: 0.0.40
codegen_flags: <defaults>
</compile_context>

<pallas_src>
import functools

import jax
import jax.numpy as jnp
from jax.experimental import pallas as pl
from jax.experimental.pallas import tpu as pltpu


def _relu6(v):
    return jnp.minimum(jnp.maximum(v, 0.0), 6.0)


def _round_up(n, m):
    return ((n + m - 1) // m) * m


def model_kernel(x_ref,
                 w1_ref, b1_ref,     # Linear(32,64)                       (bf16 W, f32 b)
                 wf_ref, bf_ref,     # fused Lin(64,32)+bbf0+repeat+Lin(64,128)
                 w4_ref, b4_ref,     # Linear(128,64)
                 w5_ref, b5_ref,     # Linear(64,64)
                 w6_ref, b6_ref,     # Linear(64,32)
                 o_ref):
    bf16 = jnp.bfloat16
    # bf16 operands, f32 MXU accumulation, f32 bias add + ReLU6, re-cast to
    # bf16 before the next matmul.
    x = x_ref[...].astype(bf16)
    h = _relu6(jnp.dot(x, w1_ref[...],
                       preferred_element_type=jnp.float32) + b1_ref[...])
    h = _relu6(jnp.dot(h.astype(bf16), wf_ref[...],
                       preferred_element_type=jnp.float32) + bf_ref[...])
    h = _relu6(jnp.dot(h.astype(bf16), w4_ref[...],
                       preferred_element_type=jnp.float32) + b4_ref[...])
    h = _relu6(jnp.dot(h.astype(bf16), w5_ref[...],
                       preferred_element_type=jnp.float32) + b5_ref[...])
    h = jnp.dot(h.astype(bf16), w6_ref[...],
                preferred_element_type=jnp.float32) + b6_ref[...]
    # Only the 32 live columns exist -> sigmoid (EUP) and store are not wasted
    # on padding.
    o_ref[...] = jax.nn.sigmoid(h)


def init_params(key):
    """Deterministic synthetic parameters matching the nn.Linear shapes."""
    dims = [(32, 64), (64, 32),            # nwp_parameterizations
            (64, 128), (128, 64),          # super_res
            (64, 64), (64, 32)]
    params = []
    for (d_in, d_out) in dims:
        key, kw, kb = jax.random.split(key, 3)
        bound = 1.0 / jnp.sqrt(d_in)
        w = jax.random.uniform(kw, (d_in, d_out), jnp.float32, -bound, bound)
        b = jax.random.uniform(kb, (1, d_out), jnp.float32, -bound, bound)
        params.append((w, b))
    return params


def fuse_params(params):
    """Host-side pre-composition of Linear2 + bbf0 affine + repeat + Linear3.

    Weights are cast to bf16 (native MXU dtype on v5e/v6e/v7x); biases are
    kept in f32 since they are added onto the f32 accumulator for free.
    """
    (w1, b1), (w2, b2), (w3, b3), (w4, b4), (w5, b5), (w6, b6) = params
    w3e = w3[:32] + w3[32:]                              # (32,128): folds repeat(1,2)
    wf = 10.0 * (w2 @ w3e)                               # (64,128)
    bf = (10.0 * b2 + 5.0) @ w3e + b3                    # (1,128)
    bf16 = jnp.bfloat16
    return [(w1.astype(bf16), b1),
            (wf.astype(bf16), bf),
            (w4.astype(bf16), b4),
            (w5.astype(bf16), b5),
            (w6.astype(bf16), b6)]


@functools.partial(jax.jit, static_argnames=("tile_b",))
def model_forward(x, fused_params, tile_b=4096):
    B = x.shape[0]

    # Balanced tiling: pick the tile count first, then split B evenly so the
    # zero-padding is at most 7 rows (instead of up to tile_b-1).
    num_tiles = max(1, -(-B // tile_b))
    # v7x has 2 TensorCores sharing the chip: give the 'parallel' batch axis
    # at least 2 grid steps once the batch is big enough to amortize the
    # ~0.35us/step overhead, so both cores get work.
    if num_tiles == 1 and B >= 1024:
        num_tiles = 2
    tb = _round_up(-(-B // num_tiles), 8)    # sublane multiple
    B_pad = num_tiles * tb
    if B_pad != B:
        x = jnp.pad(x, ((0, B_pad - B), (0, 0)))

    flat = [x]
    in_specs = [pl.BlockSpec((tb, 32), lambda i: (i, 0))]
    for (w, b) in fused_params:
        flat.extend([w, b])
        # Full-array, constant-index blocks: the ~50 KiB of bf16 weights stay
        # resident in VMEM across all grid steps.
        in_specs.append(pl.BlockSpec(w.shape, lambda i: (0, 0)))
        in_specs.append(pl.BlockSpec(b.shape, lambda i: (0, 0)))

    out = pl.pallas_call(
        model_kernel,
        out_shape=jax.ShapeDtypeStruct((B_pad, 32), jnp.float32),
        grid=(num_tiles,),
        in_specs=in_specs,
        out_specs=pl.BlockSpec((tb, 32), lambda i: (i, 0)),
        compiler_params=pltpu.CompilerParams(
            dimension_semantics=("parallel",),
            # tb=4096: ~1 MiB dbl-buffered input + ~1 MiB dbl-buffered output
            # + a few MiB of intermediates; 32 MiB gives ample headroom on
            # every generation (v5e default scoped limit is only 16 MiB,
            # v7x physical per-TC VMEM is 64 MiB).
            vmem_limit_bytes=32 * 1024 * 1024),
    )(*flat)

    return out if B_pad == B else out[:B]


def _reference_forward(x, params):
    """Plain-JAX f32 reference mirroring the original (unfused) PyTorch graph."""
    (w1, b1), (w2, b2), (w3, b3), (w4, b4), (w5, b5), (w6, b6) = params
    h = _relu6(x @ w1 + b1)
    h = h @ w2 + b2
    h = 10.0 * h + 5.0
    h = jnp.concatenate([h, h], axis=1)
    h = _relu6(h @ w3 + b3)
    h = _relu6(h @ w4 + b4)
    h = _relu6(h @ w5 + b5)
    return jax.nn.sigmoid(h @ w6 + b6)


if __name__ == "__main__":
    key = jax.random.PRNGKey(0)
    kx, kp = jax.random.split(key)

    B = 8
    x = jax.random.normal(kx, (B, 32), jnp.float32)
    params = init_params(kp)
    fused = fuse_params(params)

    out = jax.block_until_ready(model_forward(x, fused))

    ref = _reference_forward(x, params)
    assert out.shape == (B, 32)
    assert out.dtype == jnp.float32
    # bf16 matmul operands (with f32 accumulation) + host-side fusion change
    # rounding; post-sigmoid outputs still agree to a few 1e-3 typically.
    err = float(jnp.max(jnp.abs(out - ref)))
    assert jnp.allclose(out, ref, atol=5e-2, rtol=0.0), err

    # TODO(synk): the EmgradWrapper finite-difference backward pass (training-only)
    # is not part of the forward semantics and is not implemented.
    print("KERNEL_OK")
</pallas_src>

<mosaic_0001>
module attributes {stable_mosaic.version = 11 : i64} {
  func.func @model_kernel(%arg0: i32, %arg1: memref<8x32xf32, #tpu.memory_space<vmem>>, %arg2: memref<32x64xbf16, #tpu.memory_space<vmem>>, %arg3: memref<1x64xf32, #tpu.memory_space<vmem>>, %arg4: memref<64x128xbf16, #tpu.memory_space<vmem>>, %arg5: memref<1x128xf32, #tpu.memory_space<vmem>>, %arg6: memref<128x64xbf16, #tpu.memory_space<vmem>>, %arg7: memref<1x64xf32, #tpu.memory_space<vmem>>, %arg8: memref<64x64xbf16, #tpu.memory_space<vmem>>, %arg9: memref<1x64xf32, #tpu.memory_space<vmem>>, %arg10: memref<64x32xbf16, #tpu.memory_space<vmem>>, %arg11: memref<1x32xf32, #tpu.memory_space<vmem>>, %arg12: memref<8x32xf32, #tpu.memory_space<vmem>>) attributes {dimension_semantics = [#tpu.dimension_semantics<parallel>], iteration_bounds = array<i64: 1>, scalar_prefetch = 0 : i64, scratch_operands = 0 : i64, tpu.core_type = #tpu.core_type<tc>, window_params = [{transform_indices = @transform_0, window_bounds = array<i64: 8, 32>}, {pipeline_mode = #tpu.pipeline_mode<synchronous>, transform_indices = @transform_1, window_bounds = array<i64: 32, 64>}, {pipeline_mode = #tpu.pipeline_mode<synchronous>, transform_indices = @transform_2, window_bounds = array<i64: 1, 64>}, {pipeline_mode = #tpu.pipeline_mode<synchronous>, transform_indices = @transform_3, window_bounds = array<i64: 64, 128>}, {pipeline_mode = #tpu.pipeline_mode<synchronous>, transform_indices = @transform_4, window_bounds = array<i64: 1, 128>}, {pipeline_mode = #tpu.pipeline_mode<synchronous>, transform_indices = @transform_5, window_bounds = array<i64: 128, 64>}, {pipeline_mode = #tpu.pipeline_mode<synchronous>, transform_indices = @transform_6, window_bounds = array<i64: 1, 64>}, {pipeline_mode = #tpu.pipeline_mode<synchronous>, transform_indices = @transform_7, window_bounds = array<i64: 64, 64>}, {pipeline_mode = #tpu.pipeline_mode<synchronous>, transform_indices = @transform_8, window_bounds = array<i64: 1, 64>}, {pipeline_mode = #tpu.pipeline_mode<synchronous>, transform_indices = @transform_9, window_bounds = array<i64: 64, 32>}, {pipeline_mode = #tpu.pipeline_mode<synchronous>, transform_indices = @transform_10, window_bounds = array<i64: 1, 32>}, {transform_indices = @transform_11, window_bounds = array<i64: 8, 32>}]} {
    %c0 = arith.constant 0 : index
    %c0_0 = arith.constant 0 : index
    %0 = vector.load %arg1[%c0, %c0_0] : memref<8x32xf32, #tpu.memory_space<vmem>>, vector<8x32xf32>
    %1 = arith.truncf %0 : vector<8x32xf32> to vector<8x32xbf16>
    %c0_1 = arith.constant 0 : index
    %c0_2 = arith.constant 0 : index
    %2 = vector.load %arg2[%c0_1, %c0_2] : memref<32x64xbf16, #tpu.memory_space<vmem>>, vector<32x64xbf16>
    %cst = arith.constant dense<0.000000e+00> : vector<8x64xf32>
    %3 = tpu.matmul %1, %2, %cst {dimension_numbers = #tpu.dot_dimension_numbers<[1], [0], [0], [1], [0, 0, 1, 1], [], []>} : vector<8x32xbf16>, vector<32x64xbf16>, vector<8x64xf32> -> vector<8x64xf32>
    %c0_3 = arith.constant 0 : index
    %c0_4 = arith.constant 0 : index
    %4 = vector.load %arg3[%c0_3, %c0_4] : memref<1x64xf32, #tpu.memory_space<vmem>>, vector<1x64xf32>
    %5 = vector.broadcast %4 : vector<1x64xf32> to vector<8x64xf32>
    %6 = arith.addf %3, %5 : vector<8x64xf32>
    %cst_5 = arith.constant 0.000000e+00 : f32
    %7 = vector.broadcast %cst_5 : f32 to vector<8x64xf32>
    %8 = arith.maximumf %6, %7 : vector<8x64xf32>
    %cst_6 = arith.constant 6.000000e+00 : f32
    %9 = vector.broadcast %cst_6 : f32 to vector<8x64xf32>
    %10 = arith.minimumf %8, %9 : vector<8x64xf32>
    %11 = arith.truncf %10 : vector<8x64xf32> to vector<8x64xbf16>
    %c0_7 = arith.constant 0 : index
    %c0_8 = arith.constant 0 : index
    %12 = vector.load %arg4[%c0_7, %c0_8] : memref<64x128xbf16, #tpu.memory_space<vmem>>, vector<64x128xbf16>
    %cst_9 = arith.constant dense<0.000000e+00> : vector<8x128xf32>
    %13 = tpu.matmul %11, %12, %cst_9 {dimension_numbers = #tpu.dot_dimension_numbers<[1], [0], [0], [1], [0, 0, 1, 1], [], []>} : vector<8x64xbf16>, vector<64x128xbf16>, vector<8x128xf32> -> vector<8x128xf32>
    %c0_10 = arith.constant 0 : index
    %c0_11 = arith.constant 0 : index
    %14 = vector.load %arg5[%c0_10, %c0_11] : memref<1x128xf32, #tpu.memory_space<vmem>>, vector<1x128xf32>
    %15 = vector.broadcast %14 : vector<1x128xf32> to vector<8x128xf32>
    %16 = arith.addf %13, %15 : vector<8x128xf32>
    %cst_12 = arith.constant 0.000000e+00 : f32
    %17 = vector.broadcast %cst_12 : f32 to vector<8x128xf32>
    %18 = arith.maximumf %16, %17 : vector<8x128xf32>
    %cst_13 = arith.constant 6.000000e+00 : f32
    %19 = vector.broadcast %cst_13 : f32 to vector<8x128xf32>
    %20 = arith.minimumf %18, %19 : vector<8x128xf32>
    %21 = arith.truncf %20 : vector<8x128xf32> to vector<8x128xbf16>
    %c0_14 = arith.constant 0 : index
    %c0_15 = arith.constant 0 : index
    %22 = vector.load %arg6[%c0_14, %c0_15] : memref<128x64xbf16, #tpu.memory_space<vmem>>, vector<128x64xbf16>
    %cst_16 = arith.constant dense<0.000000e+00> : vector<8x64xf32>
    %23 = tpu.matmul %21, %22, %cst_16 {dimension_numbers = #tpu.dot_dimension_numbers<[1], [0], [0], [1], [0, 0, 1, 1], [], []>} : vector<8x128xbf16>, vector<128x64xbf16>, vector<8x64xf32> -> vector<8x64xf32>
    %c0_17 = arith.constant 0 : index
    %c0_18 = arith.constant 0 : index
    %24 = vector.load %arg7[%c0_17, %c0_18] : memref<1x64xf32, #tpu.memory_space<vmem>>, vector<1x64xf32>
    %25 = vector.broadcast %24 : vector<1x64xf32> to vector<8x64xf32>
    %26 = arith.addf %23, %25 : vector<8x64xf32>
    %cst_19 = arith.constant 0.000000e+00 : f32
    %27 = vector.broadcast %cst_19 : f32 to vector<8x64xf32>
    %28 = arith.maximumf %26, %27 : vector<8x64xf32>
    %cst_20 = arith.constant 6.000000e+00 : f32
    %29 = vector.broadcast %cst_20 : f32 to vector<8x64xf32>
    %30 = arith.minimumf %28, %29 : vector<8x64xf32>
    %31 = arith.truncf %30 : vector<8x64xf32> to vector<8x64xbf16>
    %c0_21 = arith.constant 0 : index
    %c0_22 = arith.constant 0 : index
    %32 = vector.load %arg8[%c0_21, %c0_22] : memref<64x64xbf16, #tpu.memory_space<vmem>>, vector<64x64xbf16>
    %cst_23 = arith.constant dense<0.000000e+00> : vector<8x64xf32>
    %33 = tpu.matmul %31, %32, %cst_23 {dimension_numbers = #tpu.dot_dimension_numbers<[1], [0], [0], [1], [0, 0, 1, 1], [], []>} : vector<8x64xbf16>, vector<64x64xbf16>, vector<8x64xf32> -> vector<8x64xf32>
    %c0_24 = arith.constant 0 : index
    %c0_25 = arith.constant 0 : index
    %34 = vector.load %arg9[%c0_24, %c0_25] : memref<1x64xf32, #tpu.memory_space<vmem>>, vector<1x64xf32>
    %35 = vector.broadcast %34 : vector<1x64xf32> to vector<8x64xf32>
    %36 = arith.addf %33, %35 : vector<8x64xf32>
    %cst_26 = arith.constant 0.000000e+00 : f32
    %37 = vector.broadcast %cst_26 : f32 to vector<8x64xf32>
    %38 = arith.maximumf %36, %37 : vector<8x64xf32>
    %cst_27 = arith.constant 6.000000e+00 : f32
    %39 = vector.broadcast %cst_27 : f32 to vector<8x64xf32>
    %40 = arith.minimumf %38, %39 : vector<8x64xf32>
    %41 = arith.truncf %40 : vector<8x64xf32> to vector<8x64xbf16>
    %c0_28 = arith.constant 0 : index
    %c0_29 = arith.constant 0 : index
    %42 = vector.load %arg10[%c0_28, %c0_29] : memref<64x32xbf16, #tpu.memory_space<vmem>>, vector<64x32xbf16>
    %cst_30 = arith.constant dense<0.000000e+00> : vector<8x32xf32>
    %43 = tpu.matmul %41, %42, %cst_30 {dimension_numbers = #tpu.dot_dimension_numbers<[1], [0], [0], [1], [0, 0, 1, 1], [], []>} : vector<8x64xbf16>, vector<64x32xbf16>, vector<8x32xf32> -> vector<8x32xf32>
    %c0_31 = arith.constant 0 : index
    %c0_32 = arith.constant 0 : index
    %44 = vector.load %arg11[%c0_31, %c0_32] : memref<1x32xf32, #tpu.memory_space<vmem>>, vector<1x32xf32>
    %45 = vector.broadcast %44 : vector<1x32xf32> to vector<8x32xf32>
    %46 = arith.addf %43, %45 : vector<8x32xf32>
    %47 = arith.negf %46 : vector<8x32xf32>
    %48 = math.exp %47 : vector<8x32xf32>
    %cst_33 = arith.constant 1.000000e+00 : f32
    %49 = vector.broadcast %cst_33 : f32 to vector<8x32xf32>
    %50 = arith.addf %49, %48 : vector<8x32xf32>
    %51 = arith.divf %49, %50 : vector<8x32xf32>
    %c0_34 = arith.constant 0 : index
    %c0_35 = arith.constant 0 : index
    %52 = vector.load %arg12[%c0_34, %c0_35] : memref<8x32xf32, #tpu.memory_space<vmem>>, vector<8x32xf32>
    tpu.vector_store %arg12[%c0_34, %c0_35], %51 {strides = array<i32>} : memref<8x32xf32, #tpu.memory_space<vmem>>, vector<8x32xf32>,
    return
  }
  func.func @transform_0(%arg0: i32) -> (i32, i32) {
    %c0_i32 = arith.constant 0 : i32
    %c0_i32_0 = arith.constant 0 : i32
    return %arg0, %c0_i32 : i32, i32
  }
  func.func @transform_1(%arg0: i32) -> (i32, i32) {
    %c0_i32 = arith.constant 0 : i32
    %c0_i32_0 = arith.constant 0 : i32
    %c0_i32_1 = arith.constant 0 : i32
    return %c0_i32, %c0_i32_0 : i32, i32
  }
  func.func @transform_2(%arg0: i32) -> (i32, i32) {
    %c0_i32 = arith.constant 0 : i32
    %c0_i32_0 = arith.constant 0 : i32
    %c0_i32_1 = arith.constant 0 : i32
    return %c0_i32, %c0_i32_0 : i32, i32
  }
  func.func @transform_3(%arg0: i32) -> (i32, i32) {
    %c0_i32 = arith.constant 0 : i32
    %c0_i32_0 = arith.constant 0 : i32
    %c0_i32_1 = arith.constant 0 : i32
    return %c0_i32, %c0_i32_0 : i32, i32
  }
  func.func @transform_4(%arg0: i32) -> (i32, i32) {
    %c0_i32 = arith.constant 0 : i32
    %c0_i32_0 = arith.constant 0 : i32
    %c0_i32_1 = arith.constant 0 : i32
    return %c0_i32, %c0_i32_0 : i32, i32
  }
  func.func @transform_5(%arg0: i32) -> (i32, i32) {
    %c0_i32 = arith.constant 0 : i32
    %c0_i32_0 = arith.constant 0 : i32
    %c0_i32_1 = arith.constant 0 : i32
    return %c0_i32, %c0_i32_0 : i32, i32
  }
  func.func @transform_6(%arg0: i32) -> (i32, i32) {
    %c0_i32 = arith.constant 0 : i32
    %c0_i32_0 = arith.constant 0 : i32
    %c0_i32_1 = arith.constant 0 : i32
    return %c0_i32, %c0_i32_0 : i32, i32
  }
  func.func @transform_7(%arg0: i32) -> (i32, i32) {
    %c0_i32 = arith.constant 0 : i32
    %c0_i32_0 = arith.constant 0 : i32
    %c0_i32_1 = arith.constant 0 : i32
    return %c0_i32, %c0_i32_0 : i32, i32
  }
  func.func @transform_8(%arg0: i32) -> (i32, i32) {
    %c0_i32 = arith.constant 0 : i32
    %c0_i32_0 = arith.constant 0 : i32
    %c0_i32_1 = arith.constant 0 : i32
    return %c0_i32, %c0_i32_0 : i32, i32
  }
  func.func @transform_9(%arg0: i32) -> (i32, i32) {
    %c0_i32 = arith.constant 0 : i32
    %c0_i32_0 = arith.constant 0 : i32
    %c0_i32_1 = arith.constant 0 : i32
    return %c0_i32, %c0_i32_0 : i32, i32
  }
  func.func @transform_10(%arg0: i32) -> (i32, i32) {
    %c0_i32 = arith.constant 0 : i32
    %c0_i32_0 = arith.constant 0 : i32
    %c0_i32_1 = arith.constant 0 : i32
    return %c0_i32, %c0_i32_0 : i32, i32
  }
  func.func @transform_11(%arg0: i32) -> (i32, i32) {
    %c0_i32 = arith.constant 0 : i32
    %c0_i32_0 = arith.constant 0 : i32
    return %arg0, %c0_i32 : i32, i32
  }
}

</mosaic_0001>

<llo_original>
// kernel: model_forward.1
$region0: #{model_forward.1}
  #allocation0 [shape = 'u32[]', space=smem, size = 0x4, offset = 0x4, fixed_abs, tag = 'smem constant byte address 0x4 - core index']
  #allocation1 [shape = 'u32[72,128]{1,0:T(1,128)}', space=vmem, size = 0x9000, scoped, tag = 'internal scratch']
  %s0 = inlined_call_operand.vmem [shape: f32[8,32], index: 0, kind: input, shape index: {}]
  %s1 = inlined_call_operand.vmem [shape: bf16[32,64], index: 1, kind: input, shape index: {}]
  %s2 = inlined_call_operand.vmem [shape: f32[1,64], index: 2, kind: input, shape index: {}]
  %s3 = inlined_call_operand.vmem [shape: bf16[64,128], index: 3, kind: input, shape index: {}]
  %s4 = inlined_call_operand.vmem [shape: f32[1,128], index: 4, kind: input, shape index: {}]
  %s5 = inlined_call_operand.vmem [shape: bf16[128,64], index: 5, kind: input, shape index: {}]
  %s6 = inlined_call_operand.vmem [shape: f32[1,64], index: 6, kind: input, shape index: {}]
  %s7 = inlined_call_operand.vmem [shape: bf16[64,64], index: 7, kind: input, shape index: {}]
  %s8 = inlined_call_operand.vmem [shape: f32[1,64], index: 8, kind: input, shape index: {}]
  %s9 = inlined_call_operand.vmem [shape: bf16[64,32], index: 9, kind: input, shape index: {}]
  %s10 = inlined_call_operand.vmem [shape: f32[1,32], index: 10, kind: input, shape index: {}]
  %s11 = inlined_call_operand.hbm [shape: f32[8,32], index: 11, kind: output, shape index: {}]
  %s12 = sld [smem:[#allocation0]]
  $region54: #{model_forward.1} parent=0
    _
  %s14 = ssub.s32 1, %s12
  %s15 = scalar_select 0, %s14, %s12
  $region1: #{model_forward.1} parent=0
    #allocation2 [shape = 'u8[4096]{0}', space=vmem, size = 0x1000, scoped, tag = 'output window, operand 0, single buffered']
    #allocation3 [shape = 's32[1]{0}', space=sflag, size = 0x4, scoped, tag = 'scoped memory for model_forward.1']
    %16 = vsyncpa [#allocation3], 0
    // Predicated region
    $region2: #{model_forward.1} parent=1 // pred_check
      _
    $region3: #{model_forward.1} parent=1 // pred_check_branch
      %18 = sbr.rel (0) target = $region5
    $region4: #{model_forward.1} parent=1 // pred_region
      _
    $region5: #{model_forward.1} parent=1 // pred_fallthru
      _
    // Predicated region
    $region6: #{model_forward.1} parent=1 // pred_check
      _
    $region7: #{model_forward.1} parent=1 // pred_check_branch
      %20 = sbr.rel (0) target = $region9
    $region8: #{model_forward.1} parent=1 // pred_region
      _
    $region9: #{model_forward.1} parent=1 // pred_fallthru
      _
    // Predicated region
    $region10: #{model_forward.1} parent=1 // pred_check
      _
    $region11: #{model_forward.1} parent=1 // pred_check_branch
      %22 = sbr.rel (0) target = $region13
    $region12: #{model_forward.1} parent=1 // pred_region
      _
    $region13: #{model_forward.1} parent=1 // pred_fallthru
      _
    // Predicated region
    $region14: #{model_forward.1} parent=1 // pred_check
      _
    $region15: #{model_forward.1} parent=1 // pred_check_branch
      %24 = sbr.rel (0) target = $region17
    $region16: #{model_forward.1} parent=1 // pred_region
      _
    $region17: #{model_forward.1} parent=1 // pred_fallthru
      _
    // Predicated region
    $region18: #{model_forward.1} parent=1 // pred_check
      _
    $region19: #{model_forward.1} parent=1 // pred_check_branch
      %26 = sbr.rel (0) target = $region21
    $region20: #{model_forward.1} parent=1 // pred_region
      _
    $region21: #{model_forward.1} parent=1 // pred_fallthru
      _
    // Predicated region
    $region22: #{model_forward.1} parent=1 // pred_check
      _
    $region23: #{model_forward.1} parent=1 // pred_check_branch
      %28 = sbr.rel (0) target = $region25
    $region24: #{model_forward.1} parent=1 // pred_region
      _
    $region25: #{model_forward.1} parent=1 // pred_fallthru
      _
    // Predicated region
    $region26: #{model_forward.1} parent=1 // pred_check
      _
    $region27: #{model_forward.1} parent=1 // pred_check_branch
      %30 = sbr.rel (0) target = $region29
    $region28: #{model_forward.1} parent=1 // pred_region
      _
    $region29: #{model_forward.1} parent=1 // pred_fallthru
      _
    // Predicated region
    $region30: #{model_forward.1} parent=1 // pred_check
      _
    $region31: #{model_forward.1} parent=1 // pred_check_branch
      %32 = sbr.rel (0) target = $region33
    $region32: #{model_forward.1} parent=1 // pred_region
      _
    $region33: #{model_forward.1} parent=1 // pred_fallthru
      _
    // Predicated region
    $region34: #{model_forward.1} parent=1 // pred_check
      _
    $region35: #{model_forward.1} parent=1 // pred_check_branch
      %34 = sbr.rel (0) target = $region37
    $region36: #{model_forward.1} parent=1 // pred_region
      _
    $region37: #{model_forward.1} parent=1 // pred_fallthru
      _
    // Predicated region
    $region38: #{model_forward.1} parent=1 // pred_check
      _
    $region39: #{model_forward.1} parent=1 // pred_check_branch
      %36 = sbr.rel (0) target = $region41
    $region40: #{model_forward.1} parent=1 // pred_region
      _
    $region41: #{model_forward.1} parent=1 // pred_fallthru
      _
    // Predicated region
    $region42: #{model_forward.1} parent=1 // pred_check
      _
    $region43: #{model_forward.1} parent=1 // pred_check_branch
      %38 = sbr.rel (0) target = $region45
    $region44: #{model_forward.1} parent=1 // pred_region
      _
    $region45: #{model_forward.1} parent=1 // pred_fallthru
      _
    %v40 = vld [vmem:[%s0] sm:$0xff]
    %v41 = vpack.c.bf16 %v40, %v40
    %v42 = vld [vmem:[%s1] sm:$0xf]
    %v43 = vld [vmem:[%s1 + $0x4] sm:$0xf]
    %v44 = vld [vmem:[%s1 + $0x8] sm:$0xf]
    %v45 = vld [vmem:[%s1 + $0xc] sm:$0xf]
    %v46 = vld [vmem:[%s2] sm:$0x1]
    %v48 = vperm.slane %v46, 0
    %v54 = vunpack.c.l.b16 %v42
    %v55 = vunpack.c.l.b16 %v43
    %v56 = vunpack.c.l.b16 %v44
    %v57 = vunpack.c.l.b16 %v45
    %v58 = vpack.c.b16 %v55, %v54
    %v59 = vpack.c.b16 %v57, %v56
    %vm62 = vcmask 261120
    %v64 = vsel %vm62, %v41, 0
    %66 = vmatpush.bf16.msra.mxu0 0
    %67 = vmatpush.bf16.msra.mxu0 0
    %68 = vmatpush.bf16.msra.mxu0 0
    %69 = vmatpush.bf16.msra.mxu0 0
    %70 = vmatpush.bf16.msra.mxu0 0
    %71 = vmatpush.bf16.msra.mxu0 0
    %72 = vmatpush.bf16.msra.mxu0 %v59
    %73 = vmatpush.bf16.msra.mxu0 %v58
    %74 = vmatmul.bf16.gmra.mxu0 %v64
    %v75 = vpop.f32.mrf.mxu0
    %v76 = vadd.f32 %v48, %v75
    %v77 = vpop.f32.mrf.mxu0
    %78 = vdwg.mxu0
    %v79 = vmax.f32 %v76, 0.0
    %v80 = vmin.f32 %v79, 6.0
    %v81 = vpack.c.bf16 %v80, %v80
    %v82 = vld [vmem:[%s3] sm:$0xf]
    %v83 = vld [vmem:[%s3 + $0x4] sm:$0xf]
    %v84 = vld [vmem:[%s3 + $0x8] sm:$0xf]
    %v85 = vld [vmem:[%s3 + $0xc] sm:$0xf]
    %v86 = vld [vmem:[%s3 + $0x10] sm:$0xf]
    %v87 = vld [vmem:[%s3 + $0x14] sm:$0xf]
    %v88 = vld [vmem:[%s3 + $0x18] sm:$0xf]
    %v89 = vld [vmem:[%s3 + $0x1c] sm:$0xf]
    %v90 = vld [vmem:[%s4] sm:$0x1]
    %v92 = vperm.slane %v90, 0
    %v102 = vunpack.c.l.b16 %v82
    %v103 = vunpack.c.l.b16 %v83
    %v104 = vunpack.c.l.b16 %v84
    %v105 = vunpack.c.l.b16 %v85
    %v106 = vunpack.c.l.b16 %v86
    %v107 = vunpack.c.l.b16 %v87
    %v108 = vunpack.c.l.b16 %v88
    %v109 = vunpack.c.l.b16 %v89
    %v110 = vpack.c.b16 %v103, %v102
    %v111 = vpack.c.b16 %v105, %v104
    %v112 = vpack.c.b16 %v107, %v106
    %v113 = vpack.c.b16 %v109, %v108
    %vm118 = vcmask 523264
    %v120 = vsel %vm118, %v81, 0
    %122 = vmatpush.bf16.msra.mxu0 0
    %123 = vmatpush.bf16.msra.mxu0 0
    %124 = vmatpush.bf16.msra.mxu0 0
    %125 = vmatpush.bf16.msra.mxu0 0
    %126 = vmatpush.bf16.msra.mxu0 %v113
    %127 = vmatpush.bf16.msra.mxu0 %v112
    %128 = vmatpush.bf16.msra.mxu0 %v111
    %129 = vmatpush.bf16.msra.mxu0 %v110
    %130 = vmatmul.bf16.gmra.mxu0 %v120
    %v131 = vpop.f32.mrf.mxu0
    %v132 = vadd.f32 %v92, %v131
    %v133 = vpop.f32.mrf.mxu0
    %134 = vdwg.mxu0
    %v135 = vmax.f32 %v132, 0.0
    %v136 = vmin.f32 %v135, 6.0
    %v137 = vpack.c.bf16 %v136, %v136
    %v138 = vld [vmem:[%s5] sm:$0xf]
    %v139 = vld [vmem:[%s5 + $0x4] sm:$0xf]
    %v140 = vld [vmem:[%s5 + $0x8] sm:$0xf]
    %v141 = vld [vmem:[%s5 + $0xc] sm:$0xf]
    %v142 = vld [vmem:[%s5 + $0x10] sm:$0xf]
    %v143 = vld [vmem:[%s5 + $0x14] sm:$0xf]
    %v144 = vld [vmem:[%s5 + $0x18] sm:$0xf]
    %v145 = vld [vmem:[%s5 + $0x1c] sm:$0xf]
    %v146 = vld [vmem:[%s5 + $0x20] sm:$0xf]
    %v147 = vld [vmem:[%s5 + $0x24] sm:$0xf]
    %v148 = vld [vmem:[%s5 + $0x28] sm:$0xf]
    %v149 = vld [vmem:[%s5 + $0x2c] sm:$0xf]
    %v150 = vld [vmem:[%s5 + $0x30] sm:$0xf]
    %v151 = vld [vmem:[%s5 + $0x34] sm:$0xf]
    %v152 = vld [vmem:[%s5 + $0x38] sm:$0xf]
    %v153 = vld [vmem:[%s5 + $0x3c] sm:$0xf]
    %v154 = vld [vmem:[%s6] sm:$0x1]
    %v156 = vperm.slane %v154, 0
    %v174 = vunpack.c.l.b16 %v138
    %v175 = vunpack.c.l.b16 %v139
    %v176 = vunpack.c.l.b16 %v140
    %v177 = vunpack.c.l.b16 %v141
    %v178 = vunpack.c.l.b16 %v142
    %v179 = vunpack.c.l.b16 %v143
    %v180 = vunpack.c.l.b16 %v144
    %v181 = vunpack.c.l.b16 %v145
    %v182 = vunpack.c.l.b16 %v146
    %v183 = vunpack.c.l.b16 %v147
    %v184 = vunpack.c.l.b16 %v148
    %v185 = vunpack.c.l.b16 %v149
    %v186 = vunpack.c.l.b16 %v150
    %v187 = vunpack.c.l.b16 %v151
    %v188 = vunpack.c.l.b16 %v152
    %v189 = vunpack.c.l.b16 %v153
    %v190 = vpack.c.b16 %v175, %v174
    %v191 = vpack.c.b16 %v177, %v176
    %v192 = vpack.c.b16 %v179, %v178
    %v193 = vpack.c.b16 %v181, %v180
    %v194 = vpack.c.b16 %v183, %v182
    %v195 = vpack.c.b16 %v185, %v184
    %v196 = vpack.c.b16 %v187, %v186
    %v197 = vpack.c.b16 %v189, %v188
    %206 = vmatpush.bf16.msra.mxu0 %v197
    %207 = vmatpush.bf16.msra.mxu0 %v196
    %208 = vmatpush.bf16.msra.mxu0 %v195
    %209 = vmatpush.bf16.msra.mxu0 %v194
    %210 = vmatpush.bf16.msra.mxu0 %v193
    %211 = vmatpush.bf16.msra.mxu0 %v192
    %212 = vmatpush.bf16.msra.mxu0 %v191
    %213 = vmatpush.bf16.msra.mxu0 %v190
    %214 = vmatmul.bf16.gmra.mxu0 %v137
    %v215 = vpop.f32.mrf.mxu0
    %v216 = vadd.f32 %v156, %v215
    %v217 = vpop.f32.mrf.mxu0
    %218 = vdwg.mxu0
    %v219 = vmax.f32 %v216, 0.0
    %v220 = vmin.f32 %v219, 6.0
    %v221 = vpack.c.bf16 %v220, %v220
    %v222 = vld [vmem:[%s7] sm:$0xf]
    %v223 = vld [vmem:[%s7 + $0x4] sm:$0xf]
    %v224 = vld [vmem:[%s7 + $0x8] sm:$0xf]
    %v225 = vld [vmem:[%s7 + $0xc] sm:$0xf]
    %v226 = vld [vmem:[%s7 + $0x10] sm:$0xf]
    %v227 = vld [vmem:[%s7 + $0x14] sm:$0xf]
    %v228 = vld [vmem:[%s7 + $0x18] sm:$0xf]
    %v229 = vld [vmem:[%s7 + $0x1c] sm:$0xf]
    %v230 = vld [vmem:[%s8] sm:$0x1]
    %v232 = vperm.slane %v230, 0
    %v242 = vunpack.c.l.b16 %v222
    %v243 = vunpack.c.l.b16 %v223
    %v244 = vunpack.c.l.b16 %v224
    %v245 = vunpack.c.l.b16 %v225
    %v246 = vunpack.c.l.b16 %v226
    %v247 = vunpack.c.l.b16 %v227
    %v248 = vunpack.c.l.b16 %v228
    %v249 = vunpack.c.l.b16 %v229
    %v250 = vpack.c.b16 %v243, %v242
    %v251 = vpack.c.b16 %v245, %v244
    %v252 = vpack.c.b16 %v247, %v246
    %v253 = vpack.c.b16 %v249, %v248
    %v259 = vsel %vm118, %v221, 0
    %261 = vmatpush.bf16.msra.mxu0 0
    %262 = vmatpush.bf16.msra.mxu0 0
    %263 = vmatpush.bf16.msra.mxu0 0
    %264 = vmatpush.bf16.msra.mxu0 0
    %265 = vmatpush.bf16.msra.mxu0 %v253
    %266 = vmatpush.bf16.msra.mxu0 %v252
    %267 = vmatpush.bf16.msra.mxu0 %v251
    %268 = vmatpush.bf16.msra.mxu0 %v250
    %269 = vmatmul.bf16.gmra.mxu0 %v259
    %v270 = vpop.f32.mrf.mxu0
    %v271 = vadd.f32 %v232, %v270
    %v272 = vpop.f32.mrf.mxu0
    %273 = vdwg.mxu0
    %v274 = vmax.f32 %v271, 0.0
    %v275 = vmin.f32 %v274, 6.0
    %v276 = vpack.c.bf16 %v275, %v275
    %v277 = vld [vmem:[%s9] sm:$0xf]
    %v278 = vld [vmem:[%s9 + $0x4] sm:$0xf]
    %v279 = vld [vmem:[%s9 + $0x8] sm:$0xf]
    %v280 = vld [vmem:[%s9 + $0xc] sm:$0xf]
    %v281 = vld [vmem:[%s9 + $0x10] sm:$0xf]
    %v282 = vld [vmem:[%s9 + $0x14] sm:$0xf]
    %v283 = vld [vmem:[%s9 + $0x18] sm:$0xf]
    %v284 = vld [vmem:[%s9 + $0x1c] sm:$0xf]
    %v285 = vld [vmem:[%s10] sm:$0x1]
    %v287 = vperm.slane %v285, 0
    %v297 = vunpack.c.l.b16 %v277
    %v298 = vunpack.c.l.b16 %v278
    %v299 = vunpack.c.l.b16 %v279
    %v300 = vunpack.c.l.b16 %v280
    %v301 = vunpack.c.l.b16 %v281
    %v302 = vunpack.c.l.b16 %v282
    %v303 = vunpack.c.l.b16 %v283
    %v304 = vunpack.c.l.b16 %v284
    %v305 = vpack.c.b16 %v298, %v297
    %v306 = vpack.c.b16 %v300, %v299
    %v307 = vpack.c.b16 %v302, %v301
    %v308 = vpack.c.b16 %v304, %v303
    %v314 = vsel %vm118, %v276, 0
    %316 = vmatpush.bf16.msra.mxu0 0
    %317 = vmatpush.bf16.msra.mxu0 0
    %318 = vmatpush.bf16.msra.mxu0 0
    %319 = vmatpush.bf16.msra.mxu0 0
    %320 = vmatpush.bf16.msra.mxu0 %v308
    %321 = vmatpush.bf16.msra.mxu0 %v307
    %322 = vmatpush.bf16.msra.mxu0 %v306
    %323 = vmatpush.bf16.msra.mxu0 %v305
    %324 = vmatmul.bf16.gmra.mxu0 %v314
    %v325 = vpop.f32.mrf.mxu0
    %v326 = vadd.f32 %v287, %v325
    %v327 = vpop.f32.mrf.mxu0
    %328 = vdwg.mxu0
    %v329 = vxor.u32 %v326, 2147483648
    %v330 = vmul.f32 %v329, 1.442695
    %v331 = vpow.pop %v330
    %v332 = vadd.f32 %v331, 1.0
    %v333 = vrcp.pop %v332
    %v334 = vmul.f32 %v332, %v333
    %v335 = vsub.f32 1.0, %v334
    %v336 = vmul.f32 %v333, %v335
    %v337 = vadd.f32 %v333, %v336
    %vm338 = vweird.f32 %v332
    %vm339 = vweird.f32 %v333
    %vm340 = vmor %vm338, %vm339
    %v341 = vsel %vm340, %v333, %v337
    %v342 = vand.u32 2147483647, %v332
    %vm343 = vcmp.eq.f32.partialorder %v342, 8.507059e+37
    %v344 = vand.u32 %v332, 2147483648
    %v345 = vor.u32 1.1754944e-38, %v344
    %v346 = vsel %vm343, %v345, %v341
    %v347 = vmul.f32 1.0, %v346
    %348 = vst.msk [vmem:[#allocation2] sm:$0xff] %vm62, %v347
    // Predicated region
    $region46: #{model_forward.1} parent=1 // pred_check
      _
    $region47: #{model_forward.1} parent=1 // pred_check_branch
      %350 = sbr.rel (0) target = $region49
    $region48: #{model_forward.1} parent=1 // pred_region
      %352 = vsyncadd [#allocation3], 0
      %s354 = sshll.u32 [#allocation2], 4
      %s355 = int_to_ptr.vmem [resolvable:$true] %s354
      %s356 = sshll.u32 %s11, 4
      %s357 = int_to_ptr.hbm [resolvable:$true] %s356
      %359 = dma.vmem_to_hbm [thread:$0]  %s355, 128, %s357, [#allocation3]
    $region49: #{model_forward.1} parent=1 // pred_fallthru
      _
    // Predicated region
    $region50: #{model_forward.1} parent=1 // pred_check
      _
    $region51: #{model_forward.1} parent=1 // pred_check_branch
      %361 = sbr.rel (0) target = $region53
    $region52: #{model_forward.1} parent=1 // pred_region
      %363 = dma.done [#allocation3], 128
    $region53: #{model_forward.1} parent=1 // pred_fallthru
      _
    %364 = vsyncpa [#allocation3], 1

</llo_original>
